<compile_context>
chip_gen: v5e
topology: v5e:2x2
jax: 0.10.0
libtpu: 0.0.40
codegen_flags: <defaults>
</compile_context>

<pallas_src>
import functools

import numpy as np
import jax
import jax.numpy as jnp
from jax.experimental import pallas as pl
from jax.experimental.pallas import tpu as pltpu
from scipy.optimize import linear_sum_assignment  # Hungarian stays on host


# ----------------------------------------------------------------------------
# Pallas kernel: fused focal class cost + L1 cdist + language CE + text penalty
# All (…, Q) operands are transposed so Q = bs*num_queries rides the 128-lane
# axis (lane-dense stores); small dims (n_pts, D, n_lan, T_pad) ride sublanes.
# Output is C^T with shape (T_pad, Q_pad).
# ----------------------------------------------------------------------------
def _cost_kernel(logits0T_ref, out_ptsT_ref, tgt_pts_ref, lanT_ref, lan_oh_ref,
                 tgt_lan_ref, text_costT_ref, c_ref, *,
                 class_weight, coord_weight, lan_weight, text_weight,
                 text_penalty, alpha, gamma):
    # --- focal class cost (class channel 0, mean over control points) -------
    p = jax.nn.sigmoid(logits0T_ref[...])                   # (n_pts, QB)
    if gamma == 2.0:                                        # pow -> square (VPU)
        p_g = p * p
        one_m_p = 1.0 - p
        q_g = one_m_p * one_m_p
    else:
        p_g = p ** gamma
        q_g = (1.0 - p) ** gamma
    neg_cost = (1.0 - alpha) * p_g * (-jnp.log(1.0 - p + 1e-8))
    pos_cost = alpha * q_g * (-jnp.log(p + 1e-8))
    cost_class = jnp.mean(pos_cost - neg_cost, axis=0, keepdims=True)  # (1, QB)

    # --- L1 cdist as per-coordinate accumulate: cheap (T_pad, QB) slabs only,
    #     no 3-D intermediate / relayout.  tgt col is (T_pad,1), out row (1,QB).
    tgt = tgt_pts_ref[...]                                  # (T_pad, D)
    out = out_ptsT_ref[...]                                 # (D, QB)
    d_dim = out.shape[0]
    cost_kpts = jnp.abs(tgt[:, 0:1] - out[0:1, :])          # (T_pad, QB)
    for d in range(1, d_dim):
        cost_kpts = cost_kpts + jnp.abs(tgt[:, d:d + 1] - out[d:d + 1, :])

    # --- language cross entropy: lse(lan[q]) - lan[q, tgt_lan[t]] ------------
    lan = lanT_ref[...]                                     # (n_lan, QB)
    m = jnp.max(lan, axis=0, keepdims=True)                 # (1, QB)
    lse = m + jnp.log(jnp.sum(jnp.exp(lan - m), axis=0, keepdims=True))
    # one-hot selection as a single MXU matmul: (T_pad, n_lan) @ (n_lan, QB)
    sel = jnp.dot(lan_oh_ref[...], lan, preferred_element_type=jnp.float32)
    cost_lan = lse - sel                                    # (T_pad, QB)

    # --- in-kernel argmax over n_lan (first-max tie-break == jnp.argmax) -----
    n_lan = lan.shape[0]
    best_val = lan[0:1, :]                                  # (1, QB)
    best_idx = jnp.zeros_like(best_val, dtype=jnp.int32)
    for j in range(1, n_lan):
        v = lan[j:j + 1, :]
        better = v > best_val
        best_val = jnp.where(better, v, best_val)
        best_idx = jnp.where(better, jnp.int32(j), best_idx)

    # --- text cost, penalized where predicted language head mismatches -------
    mismatch = tgt_lan_ref[...] != best_idx                 # (T_pad,1)!=(1,QB)
    text_cost = jnp.where(mismatch, jnp.float32(text_penalty), text_costT_ref[...])

    c_ref[...] = (class_weight * cost_class + coord_weight * cost_kpts
                  + lan_weight * cost_lan + text_weight * text_cost)


def compute_cost_matrix(logits0T, out_ptsT, tgt_pts, lanT, lan_oh,
                        tgt_lan_col, text_costT, *, q_block, **weights):
    n_pts, Q_pad = logits0T.shape
    D = out_ptsT.shape[0]
    T_pad = tgt_pts.shape[0]
    n_lan = lanT.shape[0]
    kernel = functools.partial(_cost_kernel, **weights)

    q_map = lambda i: (0, i)        # tiles the Q (lane) axis
    fixed_map = lambda i: (0, 0)    # per-target operands, same block every step

    # Constant-index operands: single-buffer (no overlap benefit from 2 bufs).
    def fixed_spec(shape):
        return pl.BlockSpec(shape, fixed_map, pipeline_mode=pl.Buffered(1))

    # VMEM budget: double-buffered Q-tiled streams + output, single-buffered
    # fixed operands, plus headroom for live (T_pad, QB) temporaries.
    qb = q_block
    est = 4 * (2 * (n_pts + D + n_lan) * qb        # Q-tiled inputs (x2 bufs)
               + 2 * T_pad * qb                    # text cost tile (x2 bufs)
               + 2 * T_pad * qb                    # output tile    (x2 bufs)
               + T_pad * (D + n_lan + 1)           # fixed target operands (x1)
               + 4 * T_pad * qb)                   # live intermediates
    vmem_limit = int(min(max(2 * est, 32 * 1024 * 1024), 48 * 1024 * 1024))

    # TODO(synk): for very large T, add a second grid axis tiling T_pad so the
    # text-cost/output tiles stay inside v7x's 64 MiB VMEM at wide q_block.
    return pl.pallas_call(
        kernel,
        out_shape=jax.ShapeDtypeStruct((T_pad, Q_pad), jnp.float32),
        grid_spec=pltpu.PrefetchScalarGridSpec(
            num_scalar_prefetch=0,
            grid=(Q_pad // q_block,),
            in_specs=[
                pl.BlockSpec((n_pts, q_block), q_map),      # logits0^T
                pl.BlockSpec((D, q_block), q_map),          # out_pts^T
                fixed_spec((T_pad, D)),                     # tgt_pts (T on sublanes)
                pl.BlockSpec((n_lan, q_block), q_map),      # lan_logits^T
                fixed_spec((T_pad, n_lan)),                 # one_hot(tgt_lan)
                fixed_spec((T_pad, 1)),                     # tgt_lan (int32)
                pl.BlockSpec((T_pad, q_block), q_map),      # text cost^T
            ],
            out_specs=pl.BlockSpec((T_pad, q_block), q_map),
        ),
        compiler_params=pltpu.CompilerParams(
            dimension_semantics=("parallel",),
            vmem_limit_bytes=vmem_limit),
    )(logits0T, out_ptsT, tgt_pts, lanT, lan_oh, tgt_lan_col, text_costT)


# ----------------------------------------------------------------------------
# CTC forward (negative log-likelihood), plain JAX (dynamic program via scan).
# TODO(synk): CTC alpha-recursion has no clean Pallas equivalent; kept in JAX.
# ----------------------------------------------------------------------------
def _ctc_loss_single(logp, targets, target_len, blank=0):
    # logp: (T_time, V) log-probabilities; targets: (S_max,) padded with 0.
    T_time, _ = logp.shape
    S = targets.shape[0]
    L = 2 * S + 1
    NEG = jnp.float32(-1e30)

    ext = jnp.zeros((L,), jnp.int32).at[1::2].set(targets)
    pos = jnp.arange(L)
    valid = pos < (2 * target_len + 1)
    ext_m2 = jnp.concatenate([jnp.full((2,), -1, jnp.int32), ext[:-2]])
    allow_skip = (ext != blank) & (ext != ext_m2)

    emit = logp[:, ext]                                               # (T_time, L)
    alpha0 = jnp.full((L,), NEG)
    alpha0 = alpha0.at[0].set(emit[0, 0])
    alpha0 = alpha0.at[1].set(jnp.where(target_len > 0, emit[0, 1], NEG))
    alpha0 = jnp.where(valid, alpha0, NEG)

    def step(alpha, emit_t):
        a1 = jnp.concatenate([jnp.array([NEG]), alpha[:-1]])
        a2 = jnp.concatenate([jnp.array([NEG, NEG]), alpha[:-2]])
        a2 = jnp.where(allow_skip, a2, NEG)
        new = jnp.logaddexp(jnp.logaddexp(alpha, a1), a2) + emit_t
        new = jnp.where(valid, new, NEG)
        return new, None

    alpha_T, _ = jax.lax.scan(step, alpha0, emit[1:])
    end1 = alpha_T[2 * target_len]
    end2 = jnp.where(target_len > 0, alpha_T[2 * target_len - 1], NEG)
    loss = -jnp.logaddexp(end1, end2)
    # zero_infinity=True semantics
    loss = jnp.where(jnp.isfinite(loss) & (loss < 1e20), loss, 0.0)
    return loss


def _pad_axis(x, axis, multiple, value=0):
    size = x.shape[axis]
    pad = (-size) % multiple
    if pad == 0:
        return x
    widths = [(0, 0)] * x.ndim
    widths[axis] = (0, pad)
    return jnp.pad(x, widths, constant_values=value)


# ----------------------------------------------------------------------------
# Full matcher forward
# ----------------------------------------------------------------------------
def ctrl_point_hungarian_matcher(outputs, targets, *, class_weight=1.0,
                                 coord_weight=1.0, text_weight=1.0,
                                 language_weight=1.0, text_penalty=20.0,
                                 focal_alpha=0.25, focal_gamma=2.0,
                                 validate=False):
    sizes = [int(v['ctrl_points'].shape[0]) for v in targets]
    bs, num_queries = outputs['pred_logits'].shape[:2]
    Q = bs * num_queries
    n_lan = outputs['pred_lan_logits'].shape[-1]

    # --- Q tile (lane axis): up to 512 wide, >=2 tiles when Q > 128 so both
    #     v7x TensorCores get work; always a multiple of 128.
    q_pad_128 = ((Q + 127) // 128) * 128
    if q_pad_128 <= 128:
        QB = 128
    else:
        QB = min(512, ((q_pad_128 // 2 + 127) // 128) * 128)
    Q_pad = ((Q + QB - 1) // QB) * QB

    logits0 = outputs['pred_logits'][..., 0].reshape(Q, -1).astype(jnp.float32)
    out_pts = outputs['pred_ctrl_points'].reshape(Q, -1).astype(jnp.float32)

    tgt_pts = jnp.concatenate([v['ctrl_points'] for v in targets], axis=0)
    T = tgt_pts.shape[0]
    tgt_flat = tgt_pts.reshape(T, -1).astype(jnp.float32)             # (T, D)

    lan_logits = outputs['pred_lan_logits'].reshape(Q, n_lan).astype(jnp.float32)
    tgt_lan = jnp.concatenate([v['languages'] for v in targets]).astype(jnp.int32)
    # Needed only for the returned per-match text-head indices (tiny (Q,) op).
    arg_lan_flat = jnp.argmax(lan_logits, axis=-1).astype(jnp.int32)

    # --- CTC text cost per (query, target), head selected by target language
    target_texts = jnp.concatenate([v['texts'] for v in targets]).astype(jnp.int32)
    target_lengths = jnp.sum((target_texts != 0).astype(jnp.int32), axis=-1)
    text_logp = jax.nn.log_softmax(
        outputs['pred_text_logits'].astype(jnp.float32), axis=-1)
    n_heads = text_logp.shape[0]
    t_time, voc = text_logp.shape[-2:]
    text_logp = text_logp.reshape(n_heads, Q, t_time, voc)
    per_target_logp = text_logp[tgt_lan]                               # (T, Q, t, V)
    ctc_tq = jax.vmap(
        lambda lp_q, tg, tl: jax.vmap(lambda lp: _ctc_loss_single(lp, tg, tl))(lp_q)
    )(per_target_logp, target_texts, target_lengths)                   # (T, Q)
    safe_len = jnp.maximum(target_lengths, 1).astype(jnp.float32)      # div-by-0 guard
    text_cost_tq = ctc_tq / safe_len[:, None]                          # (T, Q)

    # --- lane-dense (Q on lanes) transposed, padded operands -----------------
    logits0T = _pad_axis(logits0.T, 1, QB)                             # (n_pts, Q_pad)
    out_ptsT = _pad_axis(out_pts.T, 1, QB)                             # (D, Q_pad)
    tgt_pts_pad = _pad_axis(tgt_flat, 0, 8)                            # (T_pad, D)
    T_pad = tgt_pts_pad.shape[0]
    lanT = _pad_axis(lan_logits.T, 1, QB)                              # (n_lan, Q_pad)
    lan_oh = _pad_axis(jax.nn.one_hot(tgt_lan, n_lan, dtype=jnp.float32),
                       0, 8)                                           # (T_pad, n_lan)
    tgt_lan_col = _pad_axis(tgt_lan[:, None], 0, 8)                    # (T_pad, 1) i32
    text_costT = _pad_axis(_pad_axis(text_cost_tq, 0, 8), 1, QB)       # (T_pad, Q_pad)

    # --- fused Pallas cost kernel (C^T, lane-dense) ---------------------------
    C_T = compute_cost_matrix(
        logits0T, out_ptsT, tgt_pts_pad, lanT, lan_oh, tgt_lan_col,
        text_costT, q_block=QB,
        class_weight=class_weight, coord_weight=coord_weight,
        lan_weight=language_weight, text_weight=text_weight,
        text_penalty=text_penalty, alpha=focal_alpha, gamma=focal_gamma)

    # Pull C^T to host once (single contiguous transfer); all transposes and
    # per-image slices below are NumPy views — no device transpose pass.
    C_T_host = np.asarray(C_T)                                         # (T_pad, Q_pad)

    if validate:  # plain-JAX reference of the kernel math (off the prod path)
        p = jax.nn.sigmoid(logits0)
        neg = (1 - focal_alpha) * p ** focal_gamma * -jnp.log(1 - p + 1e-8)
        pos = focal_alpha * (1 - p) ** focal_gamma * -jnp.log(p + 1e-8)
        cc = jnp.mean(pos - neg, axis=-1, keepdims=True)
        ck = jnp.sum(jnp.abs(out_pts[:, None, :] - tgt_flat[None, :, :]), axis=-1)
        cl = (jax.nn.logsumexp(lan_logits, axis=-1, keepdims=True)
              - lan_logits[jnp.arange(Q)[:, None], tgt_lan[None, :]])
        tc = jnp.where(arg_lan_flat[:, None] != tgt_lan[None, :],
                       text_penalty, text_cost_tq.T)
        C_ref = (class_weight * cc + coord_weight * ck
                 + language_weight * cl + text_weight * tc)
        np.testing.assert_allclose(C_T_host[:T, :Q].T, np.asarray(C_ref),
                                   rtol=1e-4, atol=1e-4)

    # --- Hungarian assignment per image (host-side, as in the reference) -----
    # TODO(synk): linear_sum_assignment is combinatorial; no Pallas equivalent.
    indices = []
    offset = 0
    for i, size in enumerate(sizes):
        # rows = queries of image i, cols = its targets (NumPy transpose view)
        cost_i = C_T_host[offset:offset + size,
                          i * num_queries:(i + 1) * num_queries].T
        row, col = linear_sum_assignment(cost_i)
        indices.append((np.asarray(row, dtype=np.int64),
                        np.asarray(col, dtype=np.int64)))
        offset += size
    batch_idx = np.concatenate(
        [np.full_like(src, i) for i, (src, _) in enumerate(indices)])
    src_idx = np.concatenate([src for src, _ in indices])
    text_head_indices = np.asarray(arg_lan_flat).reshape(bs, num_queries)[
        batch_idx, src_idx]
    return indices, (batch_idx, src_idx), text_head_indices, C_T


# ----------------------------------------------------------------------------
if __name__ == "__main__":
    key = jax.random.PRNGKey(0)
    bs, nq, n_pts, n_classes, n_lan, voc, max_len = 2, 8, 8, 1, 2, 8, 6
    sizes = [3, 5]
    keys = jax.random.split(key, 6)

    outputs = {
        'pred_logits': jax.random.normal(keys[0], (bs, nq, n_pts, n_classes),
                                         jnp.float32),
        'pred_ctrl_points': jax.random.uniform(keys[1], (bs, nq, n_pts, 2),
                                               dtype=jnp.float32),
        'pred_lan_logits': jax.random.normal(keys[2], (bs, nq, n_lan),
                                             jnp.float32),
        'pred_text_logits': jax.random.normal(keys[3],
                                              (n_lan, bs, nq, n_pts, voc),
                                              jnp.float32),
    }

    targets = []
    k = keys[4]
    for n_i in sizes:
        k, k1, k2, k3, k4 = jax.random.split(k, 5)
        ctrl = jax.random.uniform(k1, (n_i, n_pts, 2), dtype=jnp.float32)
        lengths = jax.random.randint(k2, (n_i,), 2, max_len)       # >= 2 chars
        chars = jax.random.randint(k3, (n_i, max_len), 1, voc)     # non-blank
        mask = jnp.arange(max_len)[None, :] < lengths[:, None]
        texts = jnp.where(mask, chars, 0).astype(jnp.int32)        # 0 = pad/blank
        langs = jax.random.randint(k4, (n_i,), 0, n_lan).astype(jnp.int32)
        targets.append({'ctrl_points': ctrl, 'texts': texts, 'languages': langs})

    indices, (batch_idx, src_idx), text_head, C = ctrl_point_hungarian_matcher(
        outputs, targets, validate=True)
    jax.block_until_ready(C)
    assert len(indices) == len(sizes)
    assert src_idx.shape[0] == sum(sizes) == text_head.shape[0]
    print("KERNEL_OK")
</pallas_src>

<mosaic_0001>
module attributes {stable_mosaic.version = 11 : i64} {
  func.func @_cost_kernel(%arg0: i32, %arg1: memref<8x128xf32, #tpu.memory_space<vmem>>, %arg2: memref<16x128xf32, #tpu.memory_space<vmem>>, %arg3: memref<8x16xf32, #tpu.memory_space<vmem>>, %arg4: memref<2x128xf32, #tpu.memory_space<vmem>>, %arg5: memref<8x2xf32, #tpu.memory_space<vmem>>, %arg6: memref<8x1xi32, #tpu.memory_space<vmem>>, %arg7: memref<8x128xf32, #tpu.memory_space<vmem>>, %arg8: memref<8x128xf32, #tpu.memory_space<vmem>>) attributes {dimension_semantics = [#tpu.dimension_semantics<parallel>], iteration_bounds = array<i64: 1>, scalar_prefetch = 0 : i64, scratch_operands = 0 : i64, tpu.core_type = #tpu.core_type<tc>, window_params = [{transform_indices = @transform_0, window_bounds = array<i64: 8, 128>}, {transform_indices = @transform_1, window_bounds = array<i64: 16, 128>}, {pipeline_mode = #tpu.pipeline_mode<synchronous>, transform_indices = @transform_2, window_bounds = array<i64: 8, 16>}, {transform_indices = @transform_3, window_bounds = array<i64: 2, 128>}, {pipeline_mode = #tpu.pipeline_mode<synchronous>, transform_indices = @transform_4, window_bounds = array<i64: 8, 2>}, {pipeline_mode = #tpu.pipeline_mode<synchronous>, transform_indices = @transform_5, window_bounds = array<i64: 8, 1>}, {transform_indices = @transform_6, window_bounds = array<i64: 8, 128>}, {transform_indices = @transform_7, window_bounds = array<i64: 8, 128>}]} {
    %c0 = arith.constant 0 : index
    %c0_0 = arith.constant 0 : index
    %0 = vector.load %arg1[%c0, %c0_0] : memref<8x128xf32, #tpu.memory_space<vmem>>, vector<8x128xf32>
    %1 = arith.negf %0 : vector<8x128xf32>
    %2 = math.exp %1 : vector<8x128xf32>
    %cst = arith.constant 1.000000e+00 : f32
    %3 = vector.broadcast %cst : f32 to vector<8x128xf32>
    %4 = arith.addf %3, %2 : vector<8x128xf32>
    %5 = arith.divf %3, %4 : vector<8x128xf32>
    %6 = arith.mulf %5, %5 : vector<8x128xf32>
    %cst_1 = arith.constant 1.000000e+00 : f32
    %7 = vector.broadcast %cst_1 : f32 to vector<8x128xf32>
    %8 = arith.subf %7, %5 : vector<8x128xf32>
    %9 = arith.mulf %8, %8 : vector<8x128xf32>
    %cst_2 = arith.constant 7.500000e-01 : f32
    %10 = vector.broadcast %cst_2 : f32 to vector<8x128xf32>
    %11 = arith.mulf %10, %6 : vector<8x128xf32>
    %cst_3 = arith.constant 1.000000e+00 : f32
    %12 = vector.broadcast %cst_3 : f32 to vector<8x128xf32>
    %13 = arith.subf %12, %5 : vector<8x128xf32>
    %cst_4 = arith.constant 9.99999993E-9 : f32
    %14 = vector.broadcast %cst_4 : f32 to vector<8x128xf32>
    %15 = arith.addf %13, %14 : vector<8x128xf32>
    %16 = math.log %15 : vector<8x128xf32>
    %cst_5 = arith.constant 0.000000e+00 : f32
    %17 = vector.broadcast %cst_5 : f32 to vector<8x128xf32>
    %18 = arith.subf %17, %16 : vector<8x128xf32>
    %19 = arith.mulf %11, %18 : vector<8x128xf32>
    %cst_6 = arith.constant 2.500000e-01 : f32
    %20 = vector.broadcast %cst_6 : f32 to vector<8x128xf32>
    %21 = arith.mulf %20, %9 : vector<8x128xf32>
    %cst_7 = arith.constant 9.99999993E-9 : f32
    %22 = vector.broadcast %cst_7 : f32 to vector<8x128xf32>
    %23 = arith.addf %5, %22 : vector<8x128xf32>
    %24 = math.log %23 : vector<8x128xf32>
    %cst_8 = arith.constant 0.000000e+00 : f32
    %25 = vector.broadcast %cst_8 : f32 to vector<8x128xf32>
    %26 = arith.subf %25, %24 : vector<8x128xf32>
    %27 = arith.mulf %21, %26 : vector<8x128xf32>
    %28 = arith.subf %27, %19 : vector<8x128xf32>
    %cst_9 = arith.constant dense<0.000000e+00> : vector<128xf32>
    %29 = vector.multi_reduction <add>, %28, %cst_9 [0] : vector<8x128xf32> to vector<128xf32>
    %30 = vector.shape_cast %29 : vector<128xf32> to vector<1x128xf32>
    %cst_10 = arith.constant 8.000000e+00 : f32
    %31 = vector.broadcast %cst_10 : f32 to vector<1x128xf32>
    %32 = arith.divf %30, %31 : vector<1x128xf32>
    %c0_11 = arith.constant 0 : index
    %c0_12 = arith.constant 0 : index
    %33 = vector.load %arg3[%c0_11, %c0_12] : memref<8x16xf32, #tpu.memory_space<vmem>>, vector<8x16xf32>
    %c0_13 = arith.constant 0 : index
    %c0_14 = arith.constant 0 : index
    %34 = vector.load %arg2[%c0_13, %c0_14] : memref<16x128xf32, #tpu.memory_space<vmem>>, vector<16x128xf32>
    %35 = vector.extract_strided_slice %33 {offsets = [0, 0], sizes = [8, 1], strides = [1, 1]} : vector<8x16xf32> to vector<8x1xf32>
    %36 = vector.extract_strided_slice %34 {offsets = [0, 0], sizes = [1, 128], strides = [1, 1]} : vector<16x128xf32> to vector<1x128xf32>
    %37 = vector.broadcast %35 : vector<8x1xf32> to vector<8x128xf32>
    %38 = vector.broadcast %36 : vector<1x128xf32> to vector<8x128xf32>
    %39 = arith.subf %37, %38 : vector<8x128xf32>
    %40 = math.absf %39 : vector<8x128xf32>
    %41 = vector.extract_strided_slice %33 {offsets = [0, 1], sizes = [8, 1], strides = [1, 1]} : vector<8x16xf32> to vector<8x1xf32>
    %42 = vector.extract_strided_slice %34 {offsets = [1, 0], sizes = [1, 128], strides = [1, 1]} : vector<16x128xf32> to vector<1x128xf32>
    %43 = vector.broadcast %41 : vector<8x1xf32> to vector<8x128xf32>
    %44 = vector.broadcast %42 : vector<1x128xf32> to vector<8x128xf32>
    %45 = arith.subf %43, %44 : vector<8x128xf32>
    %46 = math.absf %45 : vector<8x128xf32>
    %47 = arith.addf %40, %46 : vector<8x128xf32>
    %48 = vector.extract_strided_slice %33 {offsets = [0, 2], sizes = [8, 1], strides = [1, 1]} : vector<8x16xf32> to vector<8x1xf32>
    %49 = vector.extract_strided_slice %34 {offsets = [2, 0], sizes = [1, 128], strides = [1, 1]} : vector<16x128xf32> to vector<1x128xf32>
    %50 = vector.broadcast %48 : vector<8x1xf32> to vector<8x128xf32>
    %51 = vector.broadcast %49 : vector<1x128xf32> to vector<8x128xf32>
    %52 = arith.subf %50, %51 : vector<8x128xf32>
    %53 = math.absf %52 : vector<8x128xf32>
    %54 = arith.addf %47, %53 : vector<8x128xf32>
    %55 = vector.extract_strided_slice %33 {offsets = [0, 3], sizes = [8, 1], strides = [1, 1]} : vector<8x16xf32> to vector<8x1xf32>
    %56 = vector.extract_strided_slice %34 {offsets = [3, 0], sizes = [1, 128], strides = [1, 1]} : vector<16x128xf32> to vector<1x128xf32>
    %57 = vector.broadcast %55 : vector<8x1xf32> to vector<8x128xf32>
    %58 = vector.broadcast %56 : vector<1x128xf32> to vector<8x128xf32>
    %59 = arith.subf %57, %58 : vector<8x128xf32>
    %60 = math.absf %59 : vector<8x128xf32>
    %61 = arith.addf %54, %60 : vector<8x128xf32>
    %62 = vector.extract_strided_slice %33 {offsets = [0, 4], sizes = [8, 1], strides = [1, 1]} : vector<8x16xf32> to vector<8x1xf32>
    %63 = vector.extract_strided_slice %34 {offsets = [4, 0], sizes = [1, 128], strides = [1, 1]} : vector<16x128xf32> to vector<1x128xf32>
    %64 = vector.broadcast %62 : vector<8x1xf32> to vector<8x128xf32>
    %65 = vector.broadcast %63 : vector<1x128xf32> to vector<8x128xf32>
    %66 = arith.subf %64, %65 : vector<8x128xf32>
    %67 = math.absf %66 : vector<8x128xf32>
    %68 = arith.addf %61, %67 : vector<8x128xf32>
    %69 = vector.extract_strided_slice %33 {offsets = [0, 5], sizes = [8, 1], strides = [1, 1]} : vector<8x16xf32> to vector<8x1xf32>
    %70 = vector.extract_strided_slice %34 {offsets = [5, 0], sizes = [1, 128], strides = [1, 1]} : vector<16x128xf32> to vector<1x128xf32>
    %71 = vector.broadcast %69 : vector<8x1xf32> to vector<8x128xf32>
    %72 = vector.broadcast %70 : vector<1x128xf32> to vector<8x128xf32>
    %73 = arith.subf %71, %72 : vector<8x128xf32>
    %74 = math.absf %73 : vector<8x128xf32>
    %75 = arith.addf %68, %74 : vector<8x128xf32>
    %76 = vector.extract_strided_slice %33 {offsets = [0, 6], sizes = [8, 1], strides = [1, 1]} : vector<8x16xf32> to vector<8x1xf32>
    %77 = vector.extract_strided_slice %34 {offsets = [6, 0], sizes = [1, 128], strides = [1, 1]} : vector<16x128xf32> to vector<1x128xf32>
    %78 = vector.broadcast %76 : vector<8x1xf32> to vector<8x128xf32>
    %79 = vector.broadcast %77 : vector<1x128xf32> to vector<8x128xf32>
    %80 = arith.subf %78, %79 : vector<8x128xf32>
    %81 = math.absf %80 : vector<8x128xf32>
    %82 = arith.addf %75, %81 : vector<8x128xf32>
    %83 = vector.extract_strided_slice %33 {offsets = [0, 7], sizes = [8, 1], strides = [1, 1]} : vector<8x16xf32> to vector<8x1xf32>
    %84 = vector.extract_strided_slice %34 {offsets = [7, 0], sizes = [1, 128], strides = [1, 1]} : vector<16x128xf32> to vector<1x128xf32>
    %85 = vector.broadcast %83 : vector<8x1xf32> to vector<8x128xf32>
    %86 = vector.broadcast %84 : vector<1x128xf32> to vector<8x128xf32>
    %87 = arith.subf %85, %86 : vector<8x128xf32>
    %88 = math.absf %87 : vector<8x128xf32>
    %89 = arith.addf %82, %88 : vector<8x128xf32>
    %90 = vector.extract_strided_slice %33 {offsets = [0, 8], sizes = [8, 1], strides = [1, 1]} : vector<8x16xf32> to vector<8x1xf32>
    %91 = vector.extract_strided_slice %34 {offsets = [8, 0], sizes = [1, 128], strides = [1, 1]} : vector<16x128xf32> to vector<1x128xf32>
    %92 = vector.broadcast %90 : vector<8x1xf32> to vector<8x128xf32>
    %93 = vector.broadcast %91 : vector<1x128xf32> to vector<8x128xf32>
    %94 = arith.subf %92, %93 : vector<8x128xf32>
    %95 = math.absf %94 : vector<8x128xf32>
    %96 = arith.addf %89, %95 : vector<8x128xf32>
    %97 = vector.extract_strided_slice %33 {offsets = [0, 9], sizes = [8, 1], strides = [1, 1]} : vector<8x16xf32> to vector<8x1xf32>
    %98 = vector.extract_strided_slice %34 {offsets = [9, 0], sizes = [1, 128], strides = [1, 1]} : vector<16x128xf32> to vector<1x128xf32>
    %99 = vector.broadcast %97 : vector<8x1xf32> to vector<8x128xf32>
    %100 = vector.broadcast %98 : vector<1x128xf32> to vector<8x128xf32>
    %101 = arith.subf %99, %100 : vector<8x128xf32>
    %102 = math.absf %101 : vector<8x128xf32>
    %103 = arith.addf %96, %102 : vector<8x128xf32>
    %104 = vector.extract_strided_slice %33 {offsets = [0, 10], sizes = [8, 1], strides = [1, 1]} : vector<8x16xf32> to vector<8x1xf32>
    %105 = vector.extract_strided_slice %34 {offsets = [10, 0], sizes = [1, 128], strides = [1, 1]} : vector<16x128xf32> to vector<1x128xf32>
    %106 = vector.broadcast %104 : vector<8x1xf32> to vector<8x128xf32>
    %107 = vector.broadcast %105 : vector<1x128xf32> to vector<8x128xf32>
    %108 = arith.subf %106, %107 : vector<8x128xf32>
    %109 = math.absf %108 : vector<8x128xf32>
    %110 = arith.addf %103, %109 : vector<8x128xf32>
    %111 = vector.extract_strided_slice %33 {offsets = [0, 11], sizes = [8, 1], strides = [1, 1]} : vector<8x16xf32> to vector<8x1xf32>
    %112 = vector.extract_strided_slice %34 {offsets = [11, 0], sizes = [1, 128], strides = [1, 1]} : vector<16x128xf32> to vector<1x128xf32>
    %113 = vector.broadcast %111 : vector<8x1xf32> to vector<8x128xf32>
    %114 = vector.broadcast %112 : vector<1x128xf32> to vector<8x128xf32>
    %115 = arith.subf %113, %114 : vector<8x128xf32>
    %116 = math.absf %115 : vector<8x128xf32>
    %117 = arith.addf %110, %116 : vector<8x128xf32>
    %118 = vector.extract_strided_slice %33 {offsets = [0, 12], sizes = [8, 1], strides = [1, 1]} : vector<8x16xf32> to vector<8x1xf32>
    %119 = vector.extract_strided_slice %34 {offsets = [12, 0], sizes = [1, 128], strides = [1, 1]} : vector<16x128xf32> to vector<1x128xf32>
    %120 = vector.broadcast %118 : vector<8x1xf32> to vector<8x128xf32>
    %121 = vector.broadcast %119 : vector<1x128xf32> to vector<8x128xf32>
    %122 = arith.subf %120, %121 : vector<8x128xf32>
    %123 = math.absf %122 : vector<8x128xf32>
    %124 = arith.addf %117, %123 : vector<8x128xf32>
    %125 = vector.extract_strided_slice %33 {offsets = [0, 13], sizes = [8, 1], strides = [1, 1]} : vector<8x16xf32> to vector<8x1xf32>
    %126 = vector.extract_strided_slice %34 {offsets = [13, 0], sizes = [1, 128], strides = [1, 1]} : vector<16x128xf32> to vector<1x128xf32>
    %127 = vector.broadcast %125 : vector<8x1xf32> to vector<8x128xf32>
    %128 = vector.broadcast %126 : vector<1x128xf32> to vector<8x128xf32>
    %129 = arith.subf %127, %128 : vector<8x128xf32>
    %130 = math.absf %129 : vector<8x128xf32>
    %131 = arith.addf %124, %130 : vector<8x128xf32>
    %132 = vector.extract_strided_slice %33 {offsets = [0, 14], sizes = [8, 1], strides = [1, 1]} : vector<8x16xf32> to vector<8x1xf32>
    %133 = vector.extract_strided_slice %34 {offsets = [14, 0], sizes = [1, 128], strides = [1, 1]} : vector<16x128xf32> to vector<1x128xf32>
    %134 = vector.broadcast %132 : vector<8x1xf32> to vector<8x128xf32>
    %135 = vector.broadcast %133 : vector<1x128xf32> to vector<8x128xf32>
    %136 = arith.subf %134, %135 : vector<8x128xf32>
    %137 = math.absf %136 : vector<8x128xf32>
    %138 = arith.addf %131, %137 : vector<8x128xf32>
    %139 = vector.extract_strided_slice %33 {offsets = [0, 15], sizes = [8, 1], strides = [1, 1]} : vector<8x16xf32> to vector<8x1xf32>
    %140 = vector.extract_strided_slice %34 {offsets = [15, 0], sizes = [1, 128], strides = [1, 1]} : vector<16x128xf32> to vector<1x128xf32>
    %141 = vector.broadcast %139 : vector<8x1xf32> to vector<8x128xf32>
    %142 = vector.broadcast %140 : vector<1x128xf32> to vector<8x128xf32>
    %143 = arith.subf %141, %142 : vector<8x128xf32>
    %144 = math.absf %143 : vector<8x128xf32>
    %145 = arith.addf %138, %144 : vector<8x128xf32>
    %c0_15 = arith.constant 0 : index
    %c0_16 = arith.constant 0 : index
    %146 = vector.load %arg4[%c0_15, %c0_16] : memref<2x128xf32, #tpu.memory_space<vmem>>, vector<2x128xf32>
    %cst_17 = arith.constant dense<0xFF800000> : vector<128xf32>
    %147 = vector.multi_reduction <maximumf>, %146, %cst_17 [0] : vector<2x128xf32> to vector<128xf32>
    %148 = vector.shape_cast %147 : vector<128xf32> to vector<1x128xf32>
    %149 = vector.broadcast %148 : vector<1x128xf32> to vector<2x128xf32>
    %150 = arith.subf %146, %149 : vector<2x128xf32>
    %151 = math.exp %150 : vector<2x128xf32>
    %cst_18 = arith.constant dense<0.000000e+00> : vector<128xf32>
    %152 = vector.multi_reduction <add>, %151, %cst_18 [0] : vector<2x128xf32> to vector<128xf32>
    %153 = vector.shape_cast %152 : vector<128xf32> to vector<1x128xf32>
    %154 = math.log %153 : vector<1x128xf32>
    %155 = arith.addf %148, %154 : vector<1x128xf32>
    %c0_19 = arith.constant 0 : index
    %c0_20 = arith.constant 0 : index
    %156 = vector.load %arg5[%c0_19, %c0_20] : memref<8x2xf32, #tpu.memory_space<vmem>>, vector<8x2xf32>
    %cst_21 = arith.constant dense<0.000000e+00> : vector<8x128xf32>
    %157 = tpu.matmul %156, %146, %cst_21 {dimension_numbers = #tpu.dot_dimension_numbers<[1], [0], [0], [1], [0, 0, 1, 1], [], []>} : vector<8x2xf32>, vector<2x128xf32>, vector<8x128xf32> -> vector<8x128xf32>
    %158 = vector.broadcast %155 : vector<1x128xf32> to vector<8x128xf32>
    %159 = arith.subf %158, %157 : vector<8x128xf32>
    %160 = vector.extract_strided_slice %146 {offsets = [0, 0], sizes = [1, 128], strides = [1, 1]} : vector<2x128xf32> to vector<1x128xf32>
    %c0_i32 = arith.constant 0 : i32
    %161 = vector.broadcast %c0_i32 : i32 to vector<1x128xi32>
    %162 = vector.extract_strided_slice %146 {offsets = [1, 0], sizes = [1, 128], strides = [1, 1]} : vector<2x128xf32> to vector<1x128xf32>
    %163 = arith.cmpf ogt, %162, %160 : vector<1x128xf32>
    %c1_i32 = arith.constant 1 : i32
    %164 = vector.broadcast %c1_i32 : i32 to vector<1x128xi32>
    %165 = arith.select %163, %164, %161 : vector<1x128xi1>, vector<1x128xi32>
    %c0_22 = arith.constant 0 : index
    %c0_23 = arith.constant 0 : index
    %166 = vector.load %arg6[%c0_22, %c0_23] : memref<8x1xi32, #tpu.memory_space<vmem>>, vector<8x1xi32>
    %167 = vector.broadcast %166 : vector<8x1xi32> to vector<8x128xi32>
    %168 = vector.broadcast %165 : vector<1x128xi32> to vector<8x128xi32>
    %169 = arith.cmpi ne, %167, %168 : vector<8x128xi32>
    %c0_24 = arith.constant 0 : index
    %c0_25 = arith.constant 0 : index
    %170 = vector.load %arg7[%c0_24, %c0_25] : memref<8x128xf32, #tpu.memory_space<vmem>>, vector<8x128xf32>
    %cst_26 = arith.constant 2.000000e+01 : f32
    %171 = vector.broadcast %cst_26 : f32 to vector<8x128xf32>
    %172 = arith.select %169, %171, %170 : vector<8x128xi1>, vector<8x128xf32>
    %cst_27 = arith.constant 1.000000e+00 : f32
    %173 = vector.broadcast %cst_27 : f32 to vector<1x128xf32>
    %174 = arith.mulf %173, %32 : vector<1x128xf32>
    %cst_28 = arith.constant 1.000000e+00 : f32
    %175 = vector.broadcast %cst_28 : f32 to vector<8x128xf32>
    %176 = arith.mulf %175, %145 : vector<8x128xf32>
    %177 = vector.broadcast %174 : vector<1x128xf32> to vector<8x128xf32>
    %178 = arith.addf %177, %176 : vector<8x128xf32>
    %cst_29 = arith.constant 1.000000e+00 : f32
    %179 = vector.broadcast %cst_29 : f32 to vector<8x128xf32>
    %180 = arith.mulf %179, %159 : vector<8x128xf32>
    %181 = arith.addf %178, %180 : vector<8x128xf32>
    %cst_30 = arith.constant 1.000000e+00 : f32
    %182 = vector.broadcast %cst_30 : f32 to vector<8x128xf32>
    %183 = arith.mulf %182, %172 : vector<8x128xf32>
    %184 = arith.addf %181, %183 : vector<8x128xf32>
    %c0_31 = arith.constant 0 : index
    %c0_32 = arith.constant 0 : index
    %185 = vector.load %arg8[%c0_31, %c0_32] : memref<8x128xf32, #tpu.memory_space<vmem>>, vector<8x128xf32>
    tpu.vector_store %arg8[%c0_31, %c0_32], %184 {strides = array<i32>} : memref<8x128xf32, #tpu.memory_space<vmem>>, vector<8x128xf32>,
    return
  }
  func.func @transform_0(%arg0: i32) -> (i32, i32) {
    %c0_i32 = arith.constant 0 : i32
    %c0_i32_0 = arith.constant 0 : i32
    return %c0_i32, %arg0 : i32, i32
  }
  func.func @transform_1(%arg0: i32) -> (i32, i32) {
    %c0_i32 = arith.constant 0 : i32
    %c0_i32_0 = arith.constant 0 : i32
    return %c0_i32, %arg0 : i32, i32
  }
  func.func @transform_2(%arg0: i32) -> (i32, i32) {
    %c0_i32 = arith.constant 0 : i32
    %c0_i32_0 = arith.constant 0 : i32
    %c0_i32_1 = arith.constant 0 : i32
    return %c0_i32, %c0_i32_0 : i32, i32
  }
  func.func @transform_3(%arg0: i32) -> (i32, i32) {
    %c0_i32 = arith.constant 0 : i32
    %c0_i32_0 = arith.constant 0 : i32
    return %c0_i32, %arg0 : i32, i32
  }
  func.func @transform_4(%arg0: i32) -> (i32, i32) {
    %c0_i32 = arith.constant 0 : i32
    %c0_i32_0 = arith.constant 0 : i32
    %c0_i32_1 = arith.constant 0 : i32
    return %c0_i32, %c0_i32_0 : i32, i32
  }
  func.func @transform_5(%arg0: i32) -> (i32, i32) {
    %c0_i32 = arith.constant 0 : i32
    %c0_i32_0 = arith.constant 0 : i32
    %c0_i32_1 = arith.constant 0 : i32
    return %c0_i32, %c0_i32_0 : i32, i32
  }
  func.func @transform_6(%arg0: i32) -> (i32, i32) {
    %c0_i32 = arith.constant 0 : i32
    %c0_i32_0 = arith.constant 0 : i32
    return %c0_i32, %arg0 : i32, i32
  }
  func.func @transform_7(%arg0: i32) -> (i32, i32) {
    %c0_i32 = arith.constant 0 : i32
    %c0_i32_0 = arith.constant 0 : i32
    return %c0_i32, %arg0 : i32, i32
  }
}

</mosaic_0001>

<llo_original>
// kernel: tpu_custom_call.1
$region0: #{tpu_custom_call.1}
  #allocation0 [shape = 'u32[]', space=smem, size = 0x4, offset = 0x4, fixed_abs, tag = 'smem constant byte address 0x4 - core index']
  #allocation1 [shape = 'u32[72,128]{1,0:T(1,128)}', space=vmem, size = 0x9000, scoped, tag = 'internal scratch']
  %s0 = inlined_call_operand.hbm [shape: f32[8,128], index: 0, kind: input, shape index: {}]
  %s1 = inlined_call_operand.vmem [shape: f32[16,128], index: 1, kind: input, shape index: {}]
  %s2 = inlined_call_operand.hbm [shape: f32[8,16], index: 2, kind: input, shape index: {}]
  %s3 = inlined_call_operand.vmem [shape: f32[2,128], index: 3, kind: input, shape index: {}]
  %s4 = inlined_call_operand.vmem [shape: f32[8,2], index: 4, kind: input, shape index: {}]
  %s5 = inlined_call_operand.vmem [shape: s32[8,1], index: 5, kind: input, shape index: {}]
  %s6 = inlined_call_operand.hbm [shape: f32[8,128], index: 6, kind: input, shape index: {}]
  %s7 = inlined_call_operand.hbm [shape: f32[8,128], index: 7, kind: output, shape index: {}]
  %s8 = sld [smem:[#allocation0]]
  $region50: #{tpu_custom_call.1} parent=0
    _
  %s10 = ssub.s32 1, %s8
  %s11 = scalar_select 0, %s10, %s8
  $region1: #{tpu_custom_call.1} parent=0
    #allocation2 [shape = 'u8[4096]{0}', space=vmem, size = 0x1000, scoped, tag = 'input window, operand 0, single buffered']
    #allocation3 [shape = 's32[1]{0}', space=sflag, size = 0x4, scoped, tag = 'scoped memory for tpu_custom_call.1']
    #allocation4 [shape = 's32[1]{0}', space=sflag, size = 0x4, scoped, tag = 'scoped memory for tpu_custom_call.1']
    #allocation5 [shape = 'u8[4096]{0}', space=vmem, size = 0x1000, scoped, tag = 'input window, operand 2, single buffered']
    #allocation6 [shape = 's32[1]{0}', space=sflag, size = 0x4, scoped, tag = 'scoped memory for tpu_custom_call.1']
    #allocation7 [shape = 'u8[4096]{0}', space=vmem, size = 0x1000, scoped, tag = 'input window, operand 6, single buffered']
    #allocation8 [shape = 'u8[4096]{0}', space=vmem, size = 0x1000, scoped, tag = 'output window, operand 0, single buffered']
    %12 = vsyncpa [#allocation3], 0
    %13 = vsyncpa [#allocation6], 0
    %14 = vsyncpa [#allocation4], 0
    // Predicated region
    $region2: #{tpu_custom_call.1} parent=1 // pred_check
      _
    $region3: #{tpu_custom_call.1} parent=1 // pred_check_branch
      %16 = sbr.rel (0) target = $region5
    $region4: #{tpu_custom_call.1} parent=1 // pred_region
      %18 = vsyncadd [#allocation3], 0
      %s20 = sshll.u32 %s0, 4
      %s21 = int_to_ptr.hbm [resolvable:$true] %s20
      %s22 = sshll.u32 [#allocation2], 4
      %s23 = int_to_ptr.vmem [resolvable:$true] %s22
      %25 = dma.hbm_to_vmem [thread:$0]  %s21, 128, %s23, [#allocation3]
    $region5: #{tpu_custom_call.1} parent=1 // pred_fallthru
      _
    // Predicated region
    $region6: #{tpu_custom_call.1} parent=1 // pred_check
      _
    $region7: #{tpu_custom_call.1} parent=1 // pred_check_branch
      %27 = sbr.rel (0) target = $region9
    $region8: #{tpu_custom_call.1} parent=1 // pred_region
      _
    $region9: #{tpu_custom_call.1} parent=1 // pred_fallthru
      _
    // Predicated region
    $region10: #{tpu_custom_call.1} parent=1 // pred_check
      _
    $region11: #{tpu_custom_call.1} parent=1 // pred_check_branch
      %29 = sbr.rel (0) target = $region13
    $region12: #{tpu_custom_call.1} parent=1 // pred_region
      %31 = vsyncadd [#allocation6], 0
      %s33 = sshll.u32 %s2, 4
      %s34 = int_to_ptr.hbm [resolvable:$true] %s33
      %s35 = sshll.u32 [#allocation5], 4
      %s36 = int_to_ptr.vmem [resolvable:$true] %s35
      %38 = dma.hbm_to_vmem [thread:$0]  %s34, 128, %s36, [#allocation6]
    $region13: #{tpu_custom_call.1} parent=1 // pred_fallthru
      _
    // Predicated region
    $region14: #{tpu_custom_call.1} parent=1 // pred_check
      _
    $region15: #{tpu_custom_call.1} parent=1 // pred_check_branch
      %40 = sbr.rel (0) target = $region17
    $region16: #{tpu_custom_call.1} parent=1 // pred_region
      _
    $region17: #{tpu_custom_call.1} parent=1 // pred_fallthru
      _
    // Predicated region
    $region18: #{tpu_custom_call.1} parent=1 // pred_check
      _
    $region19: #{tpu_custom_call.1} parent=1 // pred_check_branch
      %42 = sbr.rel (0) target = $region21
    $region20: #{tpu_custom_call.1} parent=1 // pred_region
      _
    $region21: #{tpu_custom_call.1} parent=1 // pred_fallthru
      _
    // Predicated region
    $region22: #{tpu_custom_call.1} parent=1 // pred_check
      _
    $region23: #{tpu_custom_call.1} parent=1 // pred_check_branch
      %44 = sbr.rel (0) target = $region25
    $region24: #{tpu_custom_call.1} parent=1 // pred_region
      _
    $region25: #{tpu_custom_call.1} parent=1 // pred_fallthru
      _
    // Predicated region
    $region26: #{tpu_custom_call.1} parent=1 // pred_check
      _
    $region27: #{tpu_custom_call.1} parent=1 // pred_check_branch
      %46 = sbr.rel (0) target = $region29
    $region28: #{tpu_custom_call.1} parent=1 // pred_region
      %48 = vsyncadd [#allocation6], 0
      %s50 = sshll.u32 %s6, 4
      %s51 = int_to_ptr.hbm [resolvable:$true] %s50
      %s52 = sshll.u32 [#allocation7], 4
      %s53 = int_to_ptr.vmem [resolvable:$true] %s52
      %55 = dma.hbm_to_vmem [thread:$0]  %s51, 128, %s53, [#allocation6]
    $region29: #{tpu_custom_call.1} parent=1 // pred_fallthru
      _
    // Predicated region
    $region30: #{tpu_custom_call.1} parent=1 // pred_check
      _
    $region31: #{tpu_custom_call.1} parent=1 // pred_check_branch
      %57 = sbr.rel (0) target = $region33
    $region32: #{tpu_custom_call.1} parent=1 // pred_region
      %59 = dma.done [#allocation3], 128
    $region33: #{tpu_custom_call.1} parent=1 // pred_fallthru
      _
    // Predicated region
    $region34: #{tpu_custom_call.1} parent=1 // pred_check
      _
    $region35: #{tpu_custom_call.1} parent=1 // pred_check_branch
      %61 = sbr.rel (0) target = $region37
    $region36: #{tpu_custom_call.1} parent=1 // pred_region
      %63 = dma.done [#allocation6], 128
    $region37: #{tpu_custom_call.1} parent=1 // pred_fallthru
      _
    // Predicated region
    $region38: #{tpu_custom_call.1} parent=1 // pred_check
      _
    $region39: #{tpu_custom_call.1} parent=1 // pred_check_branch
      %65 = sbr.rel (0) target = $region41
    $region40: #{tpu_custom_call.1} parent=1 // pred_region
      %67 = dma.done [#allocation6], 128
    $region41: #{tpu_custom_call.1} parent=1 // pred_fallthru
      _
    %v68 = vld [vmem:[#allocation2] sm:$0xff]
    %v69 = vxor.u32 %v68, 2147483648
    %v70 = vmul.f32 %v69, 1.442695
    %v71 = vpow.pop %v70
    %v72 = vadd.f32 %v71, 1.0
    %v73 = vrcp.pop %v72
    %v74 = vmul.f32 %v72, %v73
    %v75 = vsub.f32 1.0, %v74
    %v76 = vmul.f32 %v73, %v75
    %v77 = vadd.f32 %v73, %v76
    %vm78 = vweird.f32 %v72
    %vm79 = vweird.f32 %v73
    %vm80 = vmor %vm78, %vm79
    %v81 = vsel %vm80, %v73, %v77
    %v82 = vand.u32 2147483647, %v72
    %vm83 = vcmp.eq.f32.partialorder %v82, 8.507059e+37
    %v84 = vand.u32 %v72, 2147483648
    %v85 = vor.u32 1.1754944e-38, %v84
    %v86 = vsel %vm83, %v85, %v81
    %v87 = vmul.f32 1.0, %v86
    %v88 = vmul.f32 %v87, %v87
    %v89 = vsub.f32 1.0, %v87
    %v90 = vmul.f32 %v89, %v89
    %v91 = vmul.f32 %v88, 0.75
    %v92 = vadd.f32 %v89, 1e-08
    %v93 = vlog2.pop %v92
    %v94 = vmul.f32 %v93, 0.6931472
    %v95 = vsub.f32 0.0, %v94
    %v96 = vmul.f32 %v91, %v95
    %v97 = vmul.f32 %v90, 0.25
    %v98 = vadd.f32 %v87, 1e-08
    %v99 = vlog2.pop %v98
    %v100 = vmul.f32 %v99, 0.6931472
    %v101 = vsub.f32 0.0, %v100
    %v102 = vmul.f32 %v97, %v101
    %v103 = vsub.f32 %v102, %v96
    %v104 = vrot.slane %v103, 4
    %v105 = vadd.f32 %v103, %v104
    %v106 = vrot.slane %v105, 2
    %v107 = vadd.f32 %v105, %v106
    %v108 = vrot.slane %v107, 1
    %v109 = vadd.f32 %v107, %v108
    %v110 = vrcp.pop 8.0
    %v111 = vmul.f32 8.0, %v110
    %v112 = vsub.f32 1.0, %v111
    %v113 = vmul.f32 %v110, %v112
    %v114 = vadd.f32 %v110, %v113
    %vm115 = vweird.f32 %v110
    %v116 = vsel %vm115, %v110, %v114
    %v117 = vmul.f32 %v109, %v116
    %v118 = vld [vmem:[#allocation5] sm:$0xff]
    %v119 = vld [vmem:[%s1] sm:$0xff]
    %v120 = vld [vmem:[%s1 + $0x8] sm:$0xff]
    %122 = vset.pattern.permute.xlu0 0
    %123 = vperm.xlu0 %122, %v118
    %v124 = vpop.permute.xlu0 %123
    %v126 = vperm.slane %v119, 0
    %v127 = vsub.f32 %v124, %v126
    %v128 = vand.u32 2147483647, %v127
    %129 = vset.pattern.permute.xlu0 1
    %130 = vperm.xlu0 %129, %v118
    %v131 = vpop.permute.xlu0 %130
    %v133 = vperm.slane %v119, 1
    %v134 = vsub.f32 %v131, %v133
    %v135 = vand.u32 2147483647, %v134
    %v136 = vadd.f32 %v128, %v135
    %137 = vset.pattern.permute.xlu0 2
    %138 = vperm.xlu0 %137, %v118
    %v139 = vpop.permute.xlu0 %138
    %v141 = vperm.slane %v119, 2
    %v142 = vsub.f32 %v139, %v141
    %v143 = vand.u32 2147483647, %v142
    %v144 = vadd.f32 %v136, %v143
    %145 = vset.pattern.permute.xlu0 3
    %146 = vperm.xlu0 %145, %v118
    %v147 = vpop.permute.xlu0 %146
    %v149 = vperm.slane %v119, 3
    %v150 = vsub.f32 %v147, %v149
    %v151 = vand.u32 2147483647, %v150
    %v152 = vadd.f32 %v144, %v151
    %153 = vset.pattern.permute.xlu0 4
    %154 = vperm.xlu0 %153, %v118
    %v155 = vpop.permute.xlu0 %154
    %v157 = vperm.slane %v119, 4
    %v158 = vsub.f32 %v155, %v157
    %v159 = vand.u32 2147483647, %v158
    %v160 = vadd.f32 %v152, %v159
    %161 = vset.pattern.permute.xlu0 5
    %162 = vperm.xlu0 %161, %v118
    %v163 = vpop.permute.xlu0 %162
    %v165 = vperm.slane %v119, 5
    %v166 = vsub.f32 %v163, %v165
    %v167 = vand.u32 2147483647, %v166
    %v168 = vadd.f32 %v160, %v167
    %169 = vset.pattern.permute.xlu0 6
    %170 = vperm.xlu0 %169, %v118
    %v171 = vpop.permute.xlu0 %170
    %v173 = vperm.slane %v119, 6
    %v174 = vsub.f32 %v171, %v173
    %v175 = vand.u32 2147483647, %v174
    %v176 = vadd.f32 %v168, %v175
    %177 = vset.pattern.permute.xlu0 7
    %178 = vperm.xlu0 %177, %v118
    %v179 = vpop.permute.xlu0 %178
    %v181 = vperm.slane %v119, 7
    %v182 = vsub.f32 %v179, %v181
    %v183 = vand.u32 2147483647, %v182
    %v184 = vadd.f32 %v176, %v183
    %185 = vset.pattern.permute.xlu0 8
    %186 = vperm.xlu0 %185, %v118
    %v187 = vpop.permute.xlu0 %186
    %v189 = vperm.slane %v120, 0
    %v190 = vsub.f32 %v187, %v189
    %v191 = vand.u32 2147483647, %v190
    %v192 = vadd.f32 %v184, %v191
    %193 = vset.pattern.permute.xlu0 9
    %194 = vperm.xlu0 %193, %v118
    %v195 = vpop.permute.xlu0 %194
    %v197 = vperm.slane %v120, 1
    %v198 = vsub.f32 %v195, %v197
    %v199 = vand.u32 2147483647, %v198
    %v200 = vadd.f32 %v192, %v199
    %201 = vset.pattern.permute.xlu0 10
    %202 = vperm.xlu0 %201, %v118
    %v203 = vpop.permute.xlu0 %202
    %v205 = vperm.slane %v120, 2
    %v206 = vsub.f32 %v203, %v205
    %v207 = vand.u32 2147483647, %v206
    %v208 = vadd.f32 %v200, %v207
    %209 = vset.pattern.permute.xlu0 11
    %210 = vperm.xlu0 %209, %v118
    %v211 = vpop.permute.xlu0 %210
    %v213 = vperm.slane %v120, 3
    %v214 = vsub.f32 %v211, %v213
    %v215 = vand.u32 2147483647, %v214
    %v216 = vadd.f32 %v208, %v215
    %217 = vset.pattern.permute.xlu0 12
    %218 = vperm.xlu0 %217, %v118
    %v219 = vpop.permute.xlu0 %218
    %v221 = vperm.slane %v120, 4
    %v222 = vsub.f32 %v219, %v221
    %v223 = vand.u32 2147483647, %v222
    %v224 = vadd.f32 %v216, %v223
    %225 = vset.pattern.permute.xlu0 13
    %226 = vperm.xlu0 %225, %v118
    %v227 = vpop.permute.xlu0 %226
    %v229 = vperm.slane %v120, 5
    %v230 = vsub.f32 %v227, %v229
    %v231 = vand.u32 2147483647, %v230
    %v232 = vadd.f32 %v224, %v231
    %233 = vset.pattern.permute.xlu0 14
    %234 = vperm.xlu0 %233, %v118
    %v235 = vpop.permute.xlu0 %234
    %v237 = vperm.slane %v120, 6
    %v238 = vsub.f32 %v235, %v237
    %v239 = vand.u32 2147483647, %v238
    %v240 = vadd.f32 %v232, %v239
    %241 = vset.pattern.permute.xlu0 15
    %242 = vperm.xlu0 %241, %v118
    %v243 = vpop.permute.xlu0 %242
    %v245 = vperm.slane %v120, 7
    %v246 = vsub.f32 %v243, %v245
    %v247 = vand.u32 2147483647, %v246
    %v248 = vadd.f32 %v240, %v247
    %v249 = vld [vmem:[%s3] sm:$0x3]
    %vm250 = vcmask 1041408
    %v251 = vsel %vm250, %v249, -inf
    %v252 = vrot.slane %v251, 4
    %v253 = vmax.f32 %v251, %v252
    %v254 = vrot.slane %v253, 2
    %v255 = vmax.f32 %v253, %v254
    %v256 = vrot.slane %v255, 1
    %v257 = vmax.f32 %v255, %v256
    %v258 = vsub.f32 %v249, %v257
    %v259 = vmul.f32 %v258, 1.442695
    %v260 = vpow.pop %v259
    %v261 = vsel %vm250, %v260, 0.0
    %v262 = vrot.slane %v261, 4
    %v263 = vadd.f32 %v261, %v262
    %v264 = vrot.slane %v263, 2
    %v265 = vadd.f32 %v263, %v264
    %v266 = vrot.slane %v265, 1
    %v267 = vadd.f32 %v265, %v266
    %v268 = vlog2.pop %v267
    %v269 = vmul.f32 %v268, 0.6931472
    %v270 = vadd.f32 %v257, %v269
    %v271 = vld [vmem:[%s4] sm:$0xff]
    %vm272 = vcmask 15360
    %v274 = vsel %vm272, %v271, 0
    %v277 = vsel %vm250, %v249, 0
    %279 = vmatpush.msra.mxu0 0.0
    %280 = vmatpush.msra.mxu0 0.0
    %281 = vmatpush.msra.mxu0 0.0
    %282 = vmatpush.msra.mxu0 0.0
    %283 = vmatpush.msra.mxu0 0.0
    %284 = vmatpush.msra.mxu0 0.0
    %285 = vmatpush.msra.mxu0 0.0
    %286 = vmatpush.msra.mxu0 0.0
    %287 = vmatpush.msra.mxu0 0.0
    %288 = vmatpush.msra.mxu0 0.0
    %289 = vmatpush.msra.mxu0 0.0
    %290 = vmatpush.msra.mxu0 0.0
    %291 = vmatpush.msra.mxu0 0.0
    %292 = vmatpush.msra.mxu0 0.0
    %293 = vmatpush.msra.mxu0 0.0
    %294 = vmatpush.msra.mxu0 %v277
    %295 = vmatmul.f32.gmra.mxu0 %v274
    %v296 = vpop.f32.mrf.mxu0
    %v297 = vadd.f32 0.0, %v296
    %298 = vdwg.mxu0
    %v299 = vsub.f32 %v270, %v297
    %v300 = vrot.slane %v249, 7
    %vm302 = vcmp.gt.f32.partialorder %v249, %v300
    %v303 = vsel %vm302, 1, 0
    %v304 = vld [vmem:[%s5] sm:$0xff]
    %305 = vset.pattern.permute.xlu0 0
    %306 = vperm.xlu0 %305, %v304
    %v307 = vpop.permute.xlu0 %306
    %v308 = vperm.slane %v303, 1
    %vm309 = vcmp.ne.s32.totalorder %v307, %v308
    %v310 = vld [vmem:[#allocation7] sm:$0xff]
    %v311 = vsel %vm309, 20.0, %v310
    %v312 = vadd.f32 %v117, %v248
    %v313 = vadd.f32 %v312, %v299
    %v314 = vadd.f32 %v313, %v311
    %315 = vst [vmem:[#allocation8] sm:$0xff] %v314
    // Predicated region
    $region42: #{tpu_custom_call.1} parent=1 // pred_check
      _
    $region43: #{tpu_custom_call.1} parent=1 // pred_check_branch
      %317 = sbr.rel (0) target = $region45
    $region44: #{tpu_custom_call.1} parent=1 // pred_region
      %319 = vsyncadd [#allocation4], 0
      %s321 = sshll.u32 [#allocation8], 4
      %s322 = int_to_ptr.vmem [resolvable:$true] %s321
      %s323 = sshll.u32 %s7, 4
      %s324 = int_to_ptr.hbm [resolvable:$true] %s323
      %326 = dma.vmem_to_hbm [thread:$0]  %s322, 128, %s324, [#allocation4]
    $region45: #{tpu_custom_call.1} parent=1 // pred_fallthru
      _
    // Predicated region
    $region46: #{tpu_custom_call.1} parent=1 // pred_check
      _
    $region47: #{tpu_custom_call.1} parent=1 // pred_check_branch
      %328 = sbr.rel (0) target = $region49
    $region48: #{tpu_custom_call.1} parent=1 // pred_region
      %330 = dma.done [#allocation4], 128
    $region49: #{tpu_custom_call.1} parent=1 // pred_fallthru
      _
    %331 = vsyncpa [#allocation3], 1
    %332 = vsyncpa [#allocation6], 1
    %333 = vsyncpa [#allocation4], 1

</llo_original>
